<compile_context>
chip_gen: v7x
topology: tpu7x:2x2x1
jax: 0.10.0
libtpu: 0.0.40
codegen_flags: <defaults>
</compile_context>

<pallas_src>
from functools import partial

import jax
import jax.numpy as jnp
from jax.experimental import pallas as pl
from jax.experimental.pallas import tpu as pltpu


def _make_row_toeplitz(w_oihw, out_w):
    """PyTorch (Cout, Cin, 3, 3) conv weight (padding=1) -> (3, W*Cin, W*Cout)
    block-Toeplitz matrices (one per kernel row) acting on UNPADDED lane-dense
    rows: the width halo is baked in by zeroing edge taps."""
    c_out, c_in, kh, kw = w_oihw.shape
    pad = (kw - 1) // 2
    p = jnp.arange(out_w)[:, None]              # input column index
    q = jnp.arange(out_w)[None, :]              # output column index
    tap = p - q + pad                           # which kw tap connects p -> q
    valid = (tap >= 0) & (tap < kw)
    tap_c = jnp.clip(tap, 0, kw - 1)
    wt = jnp.transpose(w_oihw, (2, 3, 1, 0))    # (kh, kw, Cin, Cout)
    blocks = wt[:, tap_c, :, :]                 # (kh, W, W, Cin, Cout)
    blocks = jnp.where(valid[None, :, :, None, None], blocks, 0.0)
    t = jnp.transpose(blocks, (0, 1, 3, 2, 4))  # (kh, W, Cin, W, Cout)
    return t.reshape(kh, out_w * c_in, out_w * c_out)


def prepare_unet_layer_params(w1, b1, w2, b2, W):
    """Build the lane-dense kernel operands ONCE per weight update."""
    Cmid, Cout = w1.shape[0], w2.shape[0]
    t1 = _make_row_toeplitz(w1, W).astype(jnp.bfloat16)   # (3, W*Cin,  W*Cmid)
    t2 = _make_row_toeplitz(w2, W).astype(jnp.bfloat16)   # (3, W*Cmid, W*Cout)
    b1_row = jnp.tile(b1, W).reshape(1, W * Cmid).astype(jnp.float32)
    b2_row = jnp.tile(b2, W).reshape(1, W * Cout).astype(jnp.float32)
    return t1, b1_row, t2, b2_row


def _unet_layer_kernel(x_ref, t1_ref, b1_ref, t2_ref, b2_ref, out_ref, h1_scr,
                       *, B, H, W, Cin, Cmid, Cout):
    # x_ref  : (B, H+2, W*Cin)     f32, row-padded lane-dense input (all batches)
    # t1_ref : (3, W*Cin,  W*Cmid) bf16 block-Toeplitz conv1 weights
    # b1_ref : (1, W*Cmid)         f32 conv1 bias tiled across W
    # t2_ref : (3, W*Cmid, W*Cout) bf16 block-Toeplitz conv2 weights
    # b2_ref : (1, W*Cout)         f32 conv2 bias tiled across W
    # out_ref: (B, H, W*Cout)      f32 lane-dense output
    # h1_scr : (B, H+2, W*Cmid)    f32 VMEM scratch (row-padded conv1 activation)
    M = B * H

    # ---- conv1: 3 lane-dense MXU matmuls (one per kernel row), M = B*H ----
    def lhs1(kh):
        return (x_ref[:, pl.ds(kh, H), :]
                .reshape(M, W * Cin).astype(jnp.bfloat16))

    acc1 = jnp.dot(lhs1(0), t1_ref[0], preferred_element_type=jnp.float32)
    for kh in (1, 2):
        acc1 = acc1 + jnp.dot(lhs1(kh), t1_ref[kh],
                              preferred_element_type=jnp.float32)
    h1 = jnp.maximum(acc1 + b1_ref[...], 0.0)            # (B*H, W*Cmid) f32

    # ---- conv2 row halo via zero-bordered VMEM scratch (no register concat) ----
    h1_scr[:, pl.ds(1, H), :] = h1.reshape(B, H, W * Cmid)
    zrow = jnp.zeros((B, 1, W * Cmid), jnp.float32)
    h1_scr[:, pl.ds(0, 1), :] = zrow
    h1_scr[:, pl.ds(H + 1, 1), :] = zrow

    # ---- conv2: 3 lane-dense MXU matmuls ----
    def lhs2(kh):
        return (h1_scr[:, pl.ds(kh, H), :]
                .reshape(M, W * Cmid).astype(jnp.bfloat16))

    acc2 = jnp.dot(lhs2(0), t2_ref[0], preferred_element_type=jnp.float32)
    for kh in (1, 2):
        acc2 = acc2 + jnp.dot(lhs2(kh), t2_ref[kh],
                              preferred_element_type=jnp.float32)
    h2 = jnp.maximum(acc2 + b2_ref[...], 0.0)            # (B*H, W*Cout) f32

    out_ref[...] = h2.reshape(B, H, W * Cout).astype(out_ref.dtype)


def unet_layer_forward(x_nchw, params):
    """x_nchw: (B, Cin, H, W) float32, params from prepare_unet_layer_params.
    Returns (B, Cout, H, W) float32 matching the PyTorch UNetLayer forward."""
    t1, b1_row, t2, b2_row = params
    B, Cin, H, W = x_nchw.shape
    Cmid = b1_row.shape[1] // W
    Cout = b2_row.shape[1] // W

    # NCHW -> row-padded lane-dense (B, H+2, W*Cin); width halo lives in T1/T2.
    x_nhwc = jnp.transpose(x_nchw, (0, 2, 3, 1))
    x_dense = jnp.pad(x_nhwc, ((0, 0), (1, 1), (0, 0), (0, 0))
                      ).reshape(B, H + 2, W * Cin)

    kernel = partial(_unet_layer_kernel,
                     B=B, H=H, W=W, Cin=Cin, Cmid=Cmid, Cout=Cout)

    out_dense = pl.pallas_call(
        kernel,
        out_shape=jax.ShapeDtypeStruct((B, H, W * Cout), x_nchw.dtype),
        grid_spec=pltpu.PrefetchScalarGridSpec(
            num_scalar_prefetch=0,
            grid=(1,),                      # single step: whole batch at once
            in_specs=[
                pl.BlockSpec((B, H + 2, W * Cin), lambda i: (0, 0, 0)),
                pl.BlockSpec((3, W * Cin, W * Cmid), lambda i: (0, 0, 0)),
                pl.BlockSpec((1, W * Cmid), lambda i: (0, 0)),
                pl.BlockSpec((3, W * Cmid, W * Cout), lambda i: (0, 0, 0)),
                pl.BlockSpec((1, W * Cout), lambda i: (0, 0)),
            ],
            out_specs=pl.BlockSpec((B, H, W * Cout), lambda i: (0, 0, 0)),
            scratch_shapes=[pltpu.VMEM((B, H + 2, W * Cmid), jnp.float32)],
        ),
        compiler_params=pltpu.CompilerParams(
            dimension_semantics=("arbitrary",)),
    )(x_dense, t1, b1_row, t2, b2_row)

    # Model boundary only: chained UNet layers should stay in the lane-dense
    # (B, H, W*Cout) layout instead of paying this transpose per layer.
    return jnp.transpose(out_dense.reshape(B, H, W, Cout), (0, 3, 1, 2))


def _reference_forward(x_nchw, w1, b1, w2, b2):
    """Pure-JAX f32 reference matching nn.Conv2d(k=3, pad=1) + ReLU, twice."""
    dn = jax.lax.conv_dimension_numbers(x_nchw.shape, w1.shape,
                                        ("NCHW", "OIHW", "NCHW"))
    h = jax.lax.conv_general_dilated(x_nchw, w1, (1, 1), ((1, 1), (1, 1)),
                                     dimension_numbers=dn)
    h = jnp.maximum(h + b1[None, :, None, None], 0.0)
    h = jax.lax.conv_general_dilated(h, w2, (1, 1), ((1, 1), (1, 1)),
                                     dimension_numbers=dn)
    return jnp.maximum(h + b2[None, :, None, None], 0.0)


if __name__ == "__main__":
    # UNetLayer(num_channels_in=4, num_channels_out=8, ndims=2)
    B, Cin, Cout, H, W = 2, 4, 8, 16, 16

    key = jax.random.PRNGKey(0)
    kx, kw1, kb1, kw2, kb2 = jax.random.split(key, 5)

    x = jax.random.normal(kx, (B, Cin, H, W), dtype=jnp.float32)
    # Deterministic synthetic parameters (PyTorch shapes: OIHW weights, (O,) bias).
    fan1 = Cin * 9
    w1 = jax.random.uniform(kw1, (Cout, Cin, 3, 3), jnp.float32,
                            -1.0 / jnp.sqrt(fan1), 1.0 / jnp.sqrt(fan1))
    b1 = jax.random.uniform(kb1, (Cout,), jnp.float32,
                            -1.0 / jnp.sqrt(fan1), 1.0 / jnp.sqrt(fan1))
    fan2 = Cout * 9
    w2 = jax.random.uniform(kw2, (Cout, Cout, 3, 3), jnp.float32,
                            -1.0 / jnp.sqrt(fan2), 1.0 / jnp.sqrt(fan2))
    b2 = jax.random.uniform(kb2, (Cout,), jnp.float32,
                            -1.0 / jnp.sqrt(fan2), 1.0 / jnp.sqrt(fan2))

    # Built once per weight update, not per forward call.
    params = prepare_unet_layer_params(w1, b1, w2, b2, W)

    out = jax.jit(unet_layer_forward)(x, params)
    out = jax.block_until_ready(out)

    ref = _reference_forward(x, w1, b1, w2, b2)
    assert out.shape == (B, Cout, H, W)
    # bf16 matmul operands (f32 accumulation) -> loosened tolerance vs f32 ref.
    assert jnp.allclose(out, ref, atol=3e-2, rtol=3e-2), "mismatch vs reference"

    print("KERNEL_OK")
</pallas_src>

<mosaic_0001>
module attributes {stable_mosaic.version = 11 : i64} {
  func.func @_unet_layer_kernel(%arg0: i32, %arg1: memref<2x18x64xf32, #tpu.memory_space<vmem>>, %arg2: memref<3x64x128xbf16, #tpu.memory_space<vmem>>, %arg3: memref<1x128xf32, #tpu.memory_space<vmem>>, %arg4: memref<3x128x128xbf16, #tpu.memory_space<vmem>>, %arg5: memref<1x128xf32, #tpu.memory_space<vmem>>, %arg6: memref<2x16x128xf32, #tpu.memory_space<vmem>>, %arg7: memref<2x18x128xf32, #tpu.memory_space<vmem>>) attributes {dimension_semantics = [#tpu.dimension_semantics<arbitrary>], iteration_bounds = array<i64: 1>, scalar_prefetch = 0 : i64, scratch_operands = 1 : i64, tpu.core_type = #tpu.core_type<tc>, window_params = [{pipeline_mode = #tpu.pipeline_mode<synchronous>, transform_indices = @transform_0, window_bounds = array<i64: 2, 18, 64>}, {pipeline_mode = #tpu.pipeline_mode<synchronous>, transform_indices = @transform_1, window_bounds = array<i64: 3, 64, 128>}, {pipeline_mode = #tpu.pipeline_mode<synchronous>, transform_indices = @transform_2, window_bounds = array<i64: 1, 128>}, {pipeline_mode = #tpu.pipeline_mode<synchronous>, transform_indices = @transform_3, window_bounds = array<i64: 3, 128, 128>}, {pipeline_mode = #tpu.pipeline_mode<synchronous>, transform_indices = @transform_4, window_bounds = array<i64: 1, 128>}, {pipeline_mode = #tpu.pipeline_mode<synchronous>, transform_indices = @transform_5, window_bounds = array<i64: 2, 16, 128>}]} {
    %c0 = arith.constant 0 : index
    %c0_0 = arith.constant 0 : index
    %c0_1 = arith.constant 0 : index
    %0 = vector.load %arg1[%c0, %c0_0, %c0_1] : memref<2x18x64xf32, #tpu.memory_space<vmem>>, vector<2x16x64xf32>
    %1 = vector.shape_cast %0 : vector<2x16x64xf32> to vector<32x64xf32>
    %2 = arith.truncf %1 : vector<32x64xf32> to vector<32x64xbf16>
    %c0_2 = arith.constant 0 : index
    %c0_3 = arith.constant 0 : index
    %c0_4 = arith.constant 0 : index
    %3 = vector.load %arg2[%c0_2, %c0_3, %c0_4] : memref<3x64x128xbf16, #tpu.memory_space<vmem>>, vector<1x64x128xbf16>
    %4 = vector.shape_cast %3 : vector<1x64x128xbf16> to vector<64x128xbf16>
    %cst = arith.constant dense<0.000000e+00> : vector<32x128xf32>
    %5 = tpu.matmul %2, %4, %cst {dimension_numbers = #tpu.dot_dimension_numbers<[1], [0], [0], [1], [0, 0, 1, 1], [], []>} : vector<32x64xbf16>, vector<64x128xbf16>, vector<32x128xf32> -> vector<32x128xf32>
    %c0_5 = arith.constant 0 : index
    %c1 = arith.constant 1 : index
    %c0_6 = arith.constant 0 : index
    %6 = vector.load %arg1[%c0_5, %c1, %c0_6] : memref<2x18x64xf32, #tpu.memory_space<vmem>>, vector<2x16x64xf32>
    %7 = vector.shape_cast %6 : vector<2x16x64xf32> to vector<32x64xf32>
    %8 = arith.truncf %7 : vector<32x64xf32> to vector<32x64xbf16>
    %c1_7 = arith.constant 1 : index
    %c0_8 = arith.constant 0 : index
    %c0_9 = arith.constant 0 : index
    %9 = vector.load %arg2[%c1_7, %c0_8, %c0_9] : memref<3x64x128xbf16, #tpu.memory_space<vmem>>, vector<1x64x128xbf16>
    %10 = vector.shape_cast %9 : vector<1x64x128xbf16> to vector<64x128xbf16>
    %cst_10 = arith.constant dense<0.000000e+00> : vector<32x128xf32>
    %11 = tpu.matmul %8, %10, %cst_10 {dimension_numbers = #tpu.dot_dimension_numbers<[1], [0], [0], [1], [0, 0, 1, 1], [], []>} : vector<32x64xbf16>, vector<64x128xbf16>, vector<32x128xf32> -> vector<32x128xf32>
    %12 = arith.addf %5, %11 : vector<32x128xf32>
    %c0_11 = arith.constant 0 : index
    %c2 = arith.constant 2 : index
    %c0_12 = arith.constant 0 : index
    %13 = vector.load %arg1[%c0_11, %c2, %c0_12] : memref<2x18x64xf32, #tpu.memory_space<vmem>>, vector<2x16x64xf32>
    %14 = vector.shape_cast %13 : vector<2x16x64xf32> to vector<32x64xf32>
    %15 = arith.truncf %14 : vector<32x64xf32> to vector<32x64xbf16>
    %c2_13 = arith.constant 2 : index
    %c0_14 = arith.constant 0 : index
    %c0_15 = arith.constant 0 : index
    %16 = vector.load %arg2[%c2_13, %c0_14, %c0_15] : memref<3x64x128xbf16, #tpu.memory_space<vmem>>, vector<1x64x128xbf16>
    %17 = vector.shape_cast %16 : vector<1x64x128xbf16> to vector<64x128xbf16>
    %cst_16 = arith.constant dense<0.000000e+00> : vector<32x128xf32>
    %18 = tpu.matmul %15, %17, %cst_16 {dimension_numbers = #tpu.dot_dimension_numbers<[1], [0], [0], [1], [0, 0, 1, 1], [], []>} : vector<32x64xbf16>, vector<64x128xbf16>, vector<32x128xf32> -> vector<32x128xf32>
    %19 = arith.addf %12, %18 : vector<32x128xf32>
    %c0_17 = arith.constant 0 : index
    %c0_18 = arith.constant 0 : index
    %20 = vector.load %arg3[%c0_17, %c0_18] : memref<1x128xf32, #tpu.memory_space<vmem>>, vector<1x128xf32>
    %21 = vector.broadcast %20 : vector<1x128xf32> to vector<32x128xf32>
    %22 = arith.addf %19, %21 : vector<32x128xf32>
    %cst_19 = arith.constant 0.000000e+00 : f32
    %23 = vector.broadcast %cst_19 : f32 to vector<32x128xf32>
    %24 = arith.maximumf %22, %23 : vector<32x128xf32>
    %25 = vector.shape_cast %24 : vector<32x128xf32> to vector<2x16x128xf32>
    %c0_20 = arith.constant 0 : index
    %c1_21 = arith.constant 1 : index
    %c0_22 = arith.constant 0 : index
    %26 = vector.load %arg7[%c0_20, %c1_21, %c0_22] : memref<2x18x128xf32, #tpu.memory_space<vmem>>, vector<2x16x128xf32>
    tpu.vector_store %arg7[%c0_20, %c1_21, %c0_22], %25 {strides = array<i32>} : memref<2x18x128xf32, #tpu.memory_space<vmem>>, vector<2x16x128xf32>,
    %cst_23 = arith.constant 0.000000e+00 : f32
    %27 = vector.broadcast %cst_23 : f32 to vector<2x1x128xf32>
    %c0_24 = arith.constant 0 : index
    %c0_25 = arith.constant 0 : index
    %c0_26 = arith.constant 0 : index
    %28 = vector.load %arg7[%c0_24, %c0_25, %c0_26] : memref<2x18x128xf32, #tpu.memory_space<vmem>>, vector<2x1x128xf32>
    tpu.vector_store %arg7[%c0_24, %c0_25, %c0_26], %27 {strides = array<i32>} : memref<2x18x128xf32, #tpu.memory_space<vmem>>, vector<2x1x128xf32>,
    %c0_27 = arith.constant 0 : index
    %c17 = arith.constant 17 : index
    %c0_28 = arith.constant 0 : index
    %29 = vector.load %arg7[%c0_27, %c17, %c0_28] : memref<2x18x128xf32, #tpu.memory_space<vmem>>, vector<2x1x128xf32>
    tpu.vector_store %arg7[%c0_27, %c17, %c0_28], %27 {strides = array<i32>} : memref<2x18x128xf32, #tpu.memory_space<vmem>>, vector<2x1x128xf32>,
    %c0_29 = arith.constant 0 : index
    %c0_30 = arith.constant 0 : index
    %c0_31 = arith.constant 0 : index
    %30 = vector.load %arg7[%c0_29, %c0_30, %c0_31] : memref<2x18x128xf32, #tpu.memory_space<vmem>>, vector<2x16x128xf32>
    %31 = vector.shape_cast %30 : vector<2x16x128xf32> to vector<32x128xf32>
    %32 = arith.truncf %31 : vector<32x128xf32> to vector<32x128xbf16>
    %c0_32 = arith.constant 0 : index
    %c0_33 = arith.constant 0 : index
    %c0_34 = arith.constant 0 : index
    %33 = vector.load %arg4[%c0_32, %c0_33, %c0_34] : memref<3x128x128xbf16, #tpu.memory_space<vmem>>, vector<1x128x128xbf16>
    %34 = vector.shape_cast %33 : vector<1x128x128xbf16> to vector<128x128xbf16>
    %cst_35 = arith.constant dense<0.000000e+00> : vector<32x128xf32>
    %35 = tpu.matmul %32, %34, %cst_35 {dimension_numbers = #tpu.dot_dimension_numbers<[1], [0], [0], [1], [0, 0, 1, 1], [], []>} : vector<32x128xbf16>, vector<128x128xbf16>, vector<32x128xf32> -> vector<32x128xf32>
    %c0_36 = arith.constant 0 : index
    %c1_37 = arith.constant 1 : index
    %c0_38 = arith.constant 0 : index
    %36 = vector.load %arg7[%c0_36, %c1_37, %c0_38] : memref<2x18x128xf32, #tpu.memory_space<vmem>>, vector<2x16x128xf32>
    %37 = vector.shape_cast %36 : vector<2x16x128xf32> to vector<32x128xf32>
    %38 = arith.truncf %37 : vector<32x128xf32> to vector<32x128xbf16>
    %c1_39 = arith.constant 1 : index
    %c0_40 = arith.constant 0 : index
    %c0_41 = arith.constant 0 : index
    %39 = vector.load %arg4[%c1_39, %c0_40, %c0_41] : memref<3x128x128xbf16, #tpu.memory_space<vmem>>, vector<1x128x128xbf16>
    %40 = vector.shape_cast %39 : vector<1x128x128xbf16> to vector<128x128xbf16>
    %cst_42 = arith.constant dense<0.000000e+00> : vector<32x128xf32>
    %41 = tpu.matmul %38, %40, %cst_42 {dimension_numbers = #tpu.dot_dimension_numbers<[1], [0], [0], [1], [0, 0, 1, 1], [], []>} : vector<32x128xbf16>, vector<128x128xbf16>, vector<32x128xf32> -> vector<32x128xf32>
    %42 = arith.addf %35, %41 : vector<32x128xf32>
    %c0_43 = arith.constant 0 : index
    %c2_44 = arith.constant 2 : index
    %c0_45 = arith.constant 0 : index
    %43 = vector.load %arg7[%c0_43, %c2_44, %c0_45] : memref<2x18x128xf32, #tpu.memory_space<vmem>>, vector<2x16x128xf32>
    %44 = vector.shape_cast %43 : vector<2x16x128xf32> to vector<32x128xf32>
    %45 = arith.truncf %44 : vector<32x128xf32> to vector<32x128xbf16>
    %c2_46 = arith.constant 2 : index
    %c0_47 = arith.constant 0 : index
    %c0_48 = arith.constant 0 : index
    %46 = vector.load %arg4[%c2_46, %c0_47, %c0_48] : memref<3x128x128xbf16, #tpu.memory_space<vmem>>, vector<1x128x128xbf16>
    %47 = vector.shape_cast %46 : vector<1x128x128xbf16> to vector<128x128xbf16>
    %cst_49 = arith.constant dense<0.000000e+00> : vector<32x128xf32>
    %48 = tpu.matmul %45, %47, %cst_49 {dimension_numbers = #tpu.dot_dimension_numbers<[1], [0], [0], [1], [0, 0, 1, 1], [], []>} : vector<32x128xbf16>, vector<128x128xbf16>, vector<32x128xf32> -> vector<32x128xf32>
    %49 = arith.addf %42, %48 : vector<32x128xf32>
    %c0_50 = arith.constant 0 : index
    %c0_51 = arith.constant 0 : index
    %50 = vector.load %arg5[%c0_50, %c0_51] : memref<1x128xf32, #tpu.memory_space<vmem>>, vector<1x128xf32>
    %51 = vector.broadcast %50 : vector<1x128xf32> to vector<32x128xf32>
    %52 = arith.addf %49, %51 : vector<32x128xf32>
    %cst_52 = arith.constant 0.000000e+00 : f32
    %53 = vector.broadcast %cst_52 : f32 to vector<32x128xf32>
    %54 = arith.maximumf %52, %53 : vector<32x128xf32>
    %55 = vector.shape_cast %54 : vector<32x128xf32> to vector<2x16x128xf32>
    %c0_53 = arith.constant 0 : index
    %c0_54 = arith.constant 0 : index
    %c0_55 = arith.constant 0 : index
    %56 = vector.load %arg6[%c0_53, %c0_54, %c0_55] : memref<2x16x128xf32, #tpu.memory_space<vmem>>, vector<2x16x128xf32>
    tpu.vector_store %arg6[%c0_53, %c0_54, %c0_55], %55 {strides = array<i32>} : memref<2x16x128xf32, #tpu.memory_space<vmem>>, vector<2x16x128xf32>,
    return
  }
  func.func @transform_0(%arg0: i32) -> (i32, i32, i32) {
    %c0_i32 = arith.constant 0 : i32
    %c0_i32_0 = arith.constant 0 : i32
    %c0_i32_1 = arith.constant 0 : i32
    %c0_i32_2 = arith.constant 0 : i32
    return %c0_i32, %c0_i32_0, %c0_i32_1 : i32, i32, i32
  }
  func.func @transform_1(%arg0: i32) -> (i32, i32, i32) {
    %c0_i32 = arith.constant 0 : i32
    %c0_i32_0 = arith.constant 0 : i32
    %c0_i32_1 = arith.constant 0 : i32
    %c0_i32_2 = arith.constant 0 : i32
    return %c0_i32, %c0_i32_0, %c0_i32_1 : i32, i32, i32
  }
  func.func @transform_2(%arg0: i32) -> (i32, i32) {
    %c0_i32 = arith.constant 0 : i32
    %c0_i32_0 = arith.constant 0 : i32
    %c0_i32_1 = arith.constant 0 : i32
    return %c0_i32, %c0_i32_0 : i32, i32
  }
  func.func @transform_3(%arg0: i32) -> (i32, i32, i32) {
    %c0_i32 = arith.constant 0 : i32
    %c0_i32_0 = arith.constant 0 : i32
    %c0_i32_1 = arith.constant 0 : i32
    %c0_i32_2 = arith.constant 0 : i32
    return %c0_i32, %c0_i32_0, %c0_i32_1 : i32, i32, i32
  }
  func.func @transform_4(%arg0: i32) -> (i32, i32) {
    %c0_i32 = arith.constant 0 : i32
    %c0_i32_0 = arith.constant 0 : i32
    %c0_i32_1 = arith.constant 0 : i32
    return %c0_i32, %c0_i32_0 : i32, i32
  }
  func.func @transform_5(%arg0: i32) -> (i32, i32, i32) {
    %c0_i32 = arith.constant 0 : i32
    %c0_i32_0 = arith.constant 0 : i32
    %c0_i32_1 = arith.constant 0 : i32
    %c0_i32_2 = arith.constant 0 : i32
    return %c0_i32, %c0_i32_0, %c0_i32_1 : i32, i32, i32
  }
}

</mosaic_0001>

<llo_original>
// kernel: unet_layer_forward.1
$region0: #{unet_layer_forward.1}
  #allocation0 [shape = 'u32[]', space=smem, size = 0x4, offset = 0x4, fixed_abs, tag = 'smem constant byte address 0x4 - core index']
  #allocation1 [shape = 'u32[144,128]{1,0:T(1,128)}', space=vmem, size = 0x12000, scoped, tag = 'internal scratch']
  #allocation2 [shape = 'f32[2,18,128]{2,1,0:T(8,128)}', space=vmem, size = 0x6000, scoped, tag = 'scratch operand']
  %s0 = inlined_call_operand.vmem [shape: f32[2,18,64], index: 0, kind: input, shape index: {}]
  %s1 = inlined_call_operand.vmem [shape: bf16[3,64,128], index: 1, kind: input, shape index: {}]
  %s2 = inlined_call_operand.vmem [shape: f32[1,128], index: 2, kind: input, shape index: {}]
  %s3 = inlined_call_operand.vmem [shape: bf16[3,128,128], index: 3, kind: input, shape index: {}]
  %s4 = inlined_call_operand.vmem [shape: f32[1,128], index: 4, kind: input, shape index: {}]
  %s5 = inlined_call_operand.vmem [shape: f32[2,16,128], index: 5, kind: output, shape index: {}]
  %s6 = sld [smem:[#allocation0]]
  $region30: #{unet_layer_forward.1} parent=0
    _
  %s8 = ssub.s32 1, %s6
  %s9 = scalar_select 0, %s8, %s6
  // Predicated region
  $region2: #{unet_layer_forward.1} parent=0 // pred_check
    _
  $region3: #{unet_layer_forward.1} parent=0 // pred_check_branch
    %11 = sbr.rel (0) target = $region5
  $region4: #{unet_layer_forward.1} parent=0 // pred_region
    _
  $region5: #{unet_layer_forward.1} parent=0 // pred_fallthru
    _
  // Predicated region
  $region6: #{unet_layer_forward.1} parent=0 // pred_check
    _
  $region7: #{unet_layer_forward.1} parent=0 // pred_check_branch
    %13 = sbr.rel (0) target = $region9
  $region8: #{unet_layer_forward.1} parent=0 // pred_region
    _
  $region9: #{unet_layer_forward.1} parent=0 // pred_fallthru
    _
  // Predicated region
  $region10: #{unet_layer_forward.1} parent=0 // pred_check
    _
  $region11: #{unet_layer_forward.1} parent=0 // pred_check_branch
    %15 = sbr.rel (0) target = $region13
  $region12: #{unet_layer_forward.1} parent=0 // pred_region
    _
  $region13: #{unet_layer_forward.1} parent=0 // pred_fallthru
    _
  // Predicated region
  $region14: #{unet_layer_forward.1} parent=0 // pred_check
    _
  $region15: #{unet_layer_forward.1} parent=0 // pred_check_branch
    %17 = sbr.rel (0) target = $region17
  $region16: #{unet_layer_forward.1} parent=0 // pred_region
    _
  $region17: #{unet_layer_forward.1} parent=0 // pred_fallthru
    _
  // Predicated region
  $region18: #{unet_layer_forward.1} parent=0 // pred_check
    _
  $region19: #{unet_layer_forward.1} parent=0 // pred_check_branch
    %19 = sbr.rel (0) target = $region21
  $region20: #{unet_layer_forward.1} parent=0 // pred_region
    _
  $region21: #{unet_layer_forward.1} parent=0 // pred_fallthru
    _
  %v21 = vld [vmem:[%s0] sm:$0xff]
  %v22 = vld [vmem:[%s0 + $0x8] sm:$0xff]
  %v23 = vld [vmem:[%s0 + $0x18] sm:$0xff]
  %v24 = vld [vmem:[%s0 + $0x20] sm:$0xff]
  %v25 = vpack.c.bf16 %v22, %v21
  %v26 = vpack.c.bf16 %v24, %v23
  %v27 = vld [vmem:[%s1] sm:$0xf]
  %v28 = vld [vmem:[%s1 + $0x4] sm:$0xf]
  %v29 = vld [vmem:[%s1 + $0x8] sm:$0xf]
  %v30 = vld [vmem:[%s1 + $0xc] sm:$0xf]
  %v31 = vld [vmem:[%s1 + $0x10] sm:$0xf]
  %v32 = vld [vmem:[%s1 + $0x14] sm:$0xf]
  %v33 = vld [vmem:[%s1 + $0x18] sm:$0xf]
  %v34 = vld [vmem:[%s1 + $0x1c] sm:$0xf]
  %v35 = vld [vmem:[%s0 + $0x1] sm:$0xff]
  %v36 = vld [vmem:[%s0 + $0x9] sm:$0xff]
  %v37 = vld [vmem:[%s0 + $0x19] sm:$0xff]
  %v38 = vld [vmem:[%s0 + $0x21] sm:$0xff]
  %v39 = vpack.c.bf16 %v36, %v35
  %v40 = vpack.c.bf16 %v38, %v37
  %s41 = scalar_lea.vmem %s1, 32
  %v42 = vld [vmem:[%s41] sm:$0xf]
  %v43 = vld [vmem:[%s41 + $0x4] sm:$0xf]
  %v44 = vld [vmem:[%s41 + $0x8] sm:$0xf]
  %v45 = vld [vmem:[%s41 + $0xc] sm:$0xf]
  %v46 = vld [vmem:[%s41 + $0x10] sm:$0xf]
  %v47 = vld [vmem:[%s41 + $0x14] sm:$0xf]
  %v48 = vld [vmem:[%s41 + $0x18] sm:$0xf]
  %v49 = vld [vmem:[%s41 + $0x1c] sm:$0xf]
  %v58 = vunpack.c.l.b16 %v42
  %v59 = vunpack.c.l.b16 %v43
  %v60 = vunpack.c.l.b16 %v44
  %v61 = vunpack.c.l.b16 %v45
  %v62 = vunpack.c.l.b16 %v46
  %v63 = vunpack.c.l.b16 %v47
  %v64 = vunpack.c.l.b16 %v48
  %v65 = vunpack.c.l.b16 %v49
  %v66 = vpack.c.b16 %v59, %v58
  %v67 = vpack.c.b16 %v61, %v60
  %v68 = vpack.c.b16 %v63, %v62
  %v69 = vpack.c.b16 %v65, %v64
  %vm74 = vcmask 523264
  %v76 = vsel %vm74, %v39, 0
  %v79 = vsel %vm74, %v40, 0
  %81 = vmatprep.subr.bf16.mxu0 0
  %82 = vmatpush1.bf16.msra.mxu0 %v66
  %83 = vmatprep.subr.bf16.mxu0 0
  %84 = vmatpush1.bf16.msra.mxu0 %v67
  %85 = vmatprep.subr.bf16.mxu0 0
  %86 = vmatpush1.bf16.msra.mxu0 %v68
  %87 = vmatprep.subr.bf16.mxu0 0
  %88 = vmatpush1.bf16.msra.mxu0 %v69
  %89 = vmatprep.subr.bf16.mxu0 0
  %90 = vmatpush1.bf16.msra.mxu0 0
  %91 = vmatprep.subr.bf16.mxu0 0
  %92 = vmatpush1.bf16.msra.mxu0 0
  %93 = vmatprep.subr.bf16.mxu0 0
  %94 = vmatpush1.bf16.msra.mxu0 0
  %95 = vmatprep.subr.bf16.mxu0 0
  %96 = vmatpush1.bf16.msra.mxu0 0
  %97 = vmatprep.subr.bf16.mxu0 0
  %98 = vmatpush1.bf16.msra.mxu0 0
  %99 = vmatprep.subr.bf16.mxu0 0
  %100 = vmatpush1.bf16.msra.mxu0 0
  %101 = vmatprep.subr.bf16.mxu0 0
  %102 = vmatpush1.bf16.msra.mxu0 0
  %103 = vmatprep.subr.bf16.mxu0 0
  %104 = vmatpush1.bf16.msra.mxu0 0
  %105 = vmatprep.subr.bf16.mxu0 0
  %106 = vmatpush1.bf16.msra.mxu0 0
  %107 = vmatprep.subr.bf16.mxu0 0
  %108 = vmatpush1.bf16.msra.mxu0 0
  %109 = vmatprep.subr.bf16.mxu0 0
  %110 = vmatpush1.bf16.msra.mxu0 0
  %111 = vmatprep.subr.bf16.mxu0 0
  %112 = vmatpush1.bf16.msra.mxu0 0
  %113 = vmatprep.mubr.bf16.mxu0 0
  %114 = vmatmul.mubr.bf16.gmra.mrb[0].mxu0 %v76
  %v115 = vpop.f32.mrb[0].mxu0
  %v116 = vadd.f32 0.0, %v115
  %v117 = vpop.f32.mrb[0].mxu0
  %v118 = vpop.f32.mrb[0].mxu0
  %v119 = vadd.f32 0.0, %v118
  %v120 = vpop.f32.mrb[0].mxu0
  %121 = vmatprep.mubr.bf16.mxu0 0
  %122 = vmatmul.mubr.bf16.gmra.mrb[0].mxu0 %v79
  %v123 = vpop.f32.mrb[0].mxu0
  %v124 = vadd.f32 0.0, %v123
  %v125 = vpop.f32.mrb[0].mxu0
  %v126 = vpop.f32.mrb[0].mxu0
  %v127 = vadd.f32 0.0, %v126
  %v128 = vpop.f32.mrb[0].mxu0
  %129 = vdwg.mxu0
  %v138 = vunpack.c.l.b16 %v27
  %v139 = vunpack.c.l.b16 %v28
  %v140 = vunpack.c.l.b16 %v29
  %v141 = vunpack.c.l.b16 %v30
  %v142 = vunpack.c.l.b16 %v31
  %v143 = vunpack.c.l.b16 %v32
  %v144 = vunpack.c.l.b16 %v33
  %v145 = vunpack.c.l.b16 %v34
  %v146 = vpack.c.b16 %v139, %v138
  %v147 = vpack.c.b16 %v141, %v140
  %v148 = vpack.c.b16 %v143, %v142
  %v149 = vpack.c.b16 %v145, %v144
  %v155 = vsel %vm74, %v25, 0
  %v158 = vsel %vm74, %v26, 0
  %160 = vmatprep.subr.bf16.mxu0 0
  %161 = vmatpush1.bf16.msra.mxu0 %v146
  %162 = vmatprep.subr.bf16.mxu0 0
  %163 = vmatpush1.bf16.msra.mxu0 %v147
  %164 = vmatprep.subr.bf16.mxu0 0
  %165 = vmatpush1.bf16.msra.mxu0 %v148
  %166 = vmatprep.subr.bf16.mxu0 0
  %167 = vmatpush1.bf16.msra.mxu0 %v149
  %168 = vmatprep.subr.bf16.mxu0 0
  %169 = vmatpush1.bf16.msra.mxu0 0
  %170 = vmatprep.subr.bf16.mxu0 0
  %171 = vmatpush1.bf16.msra.mxu0 0
  %172 = vmatprep.subr.bf16.mxu0 0
  %173 = vmatpush1.bf16.msra.mxu0 0
  %174 = vmatprep.subr.bf16.mxu0 0
  %175 = vmatpush1.bf16.msra.mxu0 0
  %176 = vmatprep.subr.bf16.mxu0 0
  %177 = vmatpush1.bf16.msra.mxu0 0
  %178 = vmatprep.subr.bf16.mxu0 0
  %179 = vmatpush1.bf16.msra.mxu0 0
  %180 = vmatprep.subr.bf16.mxu0 0
  %181 = vmatpush1.bf16.msra.mxu0 0
  %182 = vmatprep.subr.bf16.mxu0 0
  %183 = vmatpush1.bf16.msra.mxu0 0
  %184 = vmatprep.subr.bf16.mxu0 0
  %185 = vmatpush1.bf16.msra.mxu0 0
  %186 = vmatprep.subr.bf16.mxu0 0
  %187 = vmatpush1.bf16.msra.mxu0 0
  %188 = vmatprep.subr.bf16.mxu0 0
  %189 = vmatpush1.bf16.msra.mxu0 0
  %190 = vmatprep.subr.bf16.mxu0 0
  %191 = vmatpush1.bf16.msra.mxu0 0
  %192 = vmatprep.mubr.bf16.mxu0 0
  %193 = vmatmul.mubr.bf16.gmra.mrb[0].mxu0 %v155
  %v194 = vpop.f32.mrb[0].mxu0
  %v195 = vadd.f32 %v116, %v194
  %v196 = vpop.f32.mrb[0].mxu0
  %v197 = vpop.f32.mrb[0].mxu0
  %v198 = vadd.f32 %v119, %v197
  %v199 = vpop.f32.mrb[0].mxu0
  %200 = vmatprep.mubr.bf16.mxu0 0
  %201 = vmatmul.mubr.bf16.gmra.mrb[0].mxu0 %v158
  %v202 = vpop.f32.mrb[0].mxu0
  %v203 = vadd.f32 %v124, %v202
  %v204 = vpop.f32.mrb[0].mxu0
  %v205 = vpop.f32.mrb[0].mxu0
  %v206 = vadd.f32 %v127, %v205
  %v207 = vpop.f32.mrb[0].mxu0
  %208 = vdwg.mxu0
  %v209 = vld [vmem:[%s0 + $0x2] sm:$0xff]
  %v210 = vld [vmem:[%s0 + $0xa] sm:$0xff]
  %v211 = vld [vmem:[%s0 + $0x1a] sm:$0xff]
  %v212 = vld [vmem:[%s0 + $0x22] sm:$0xff]
  %v213 = vpack.c.bf16 %v210, %v209
  %v214 = vpack.c.bf16 %v212, %v211
  %s215 = scalar_lea.vmem %s1, 64
  %v216 = vld [vmem:[%s215] sm:$0xf]
  %v217 = vld [vmem:[%s215 + $0x4] sm:$0xf]
  %v218 = vld [vmem:[%s215 + $0x8] sm:$0xf]
  %v219 = vld [vmem:[%s215 + $0xc] sm:$0xf]
  %v220 = vld [vmem:[%s215 + $0x10] sm:$0xf]
  %v221 = vld [vmem:[%s215 + $0x14] sm:$0xf]
  %v222 = vld [vmem:[%s215 + $0x18] sm:$0xf]
  %v223 = vld [vmem:[%s215 + $0x1c] sm:$0xf]
  %v232 = vunpack.c.l.b16 %v216
  %v233 = vunpack.c.l.b16 %v217
  %v234 = vunpack.c.l.b16 %v218
  %v235 = vunpack.c.l.b16 %v219
  %v236 = vunpack.c.l.b16 %v220
  %v237 = vunpack.c.l.b16 %v221
  %v238 = vunpack.c.l.b16 %v222
  %v239 = vunpack.c.l.b16 %v223
  %v240 = vpack.c.b16 %v233, %v232
  %v241 = vpack.c.b16 %v235, %v234
  %v242 = vpack.c.b16 %v237, %v236
  %v243 = vpack.c.b16 %v239, %v238
  %v249 = vsel %vm74, %v213, 0
  %v252 = vsel %vm74, %v214, 0
  %254 = vmatprep.subr.bf16.mxu0 0
  %255 = vmatpush1.bf16.msra.mxu0 %v240
  %256 = vmatprep.subr.bf16.mxu0 0
  %257 = vmatpush1.bf16.msra.mxu0 %v241
  %258 = vmatprep.subr.bf16.mxu0 0
  %259 = vmatpush1.bf16.msra.mxu0 %v242
  %260 = vmatprep.subr.bf16.mxu0 0
  %261 = vmatpush1.bf16.msra.mxu0 %v243
  %262 = vmatprep.subr.bf16.mxu0 0
  %263 = vmatpush1.bf16.msra.mxu0 0
  %264 = vmatprep.subr.bf16.mxu0 0
  %265 = vmatpush1.bf16.msra.mxu0 0
  %266 = vmatprep.subr.bf16.mxu0 0
  %267 = vmatpush1.bf16.msra.mxu0 0
  %268 = vmatprep.subr.bf16.mxu0 0
  %269 = vmatpush1.bf16.msra.mxu0 0
  %270 = vmatprep.subr.bf16.mxu0 0
  %271 = vmatpush1.bf16.msra.mxu0 0
  %272 = vmatprep.subr.bf16.mxu0 0
  %273 = vmatpush1.bf16.msra.mxu0 0
  %274 = vmatprep.subr.bf16.mxu0 0
  %275 = vmatpush1.bf16.msra.mxu0 0
  %276 = vmatprep.subr.bf16.mxu0 0
  %277 = vmatpush1.bf16.msra.mxu0 0
  %278 = vmatprep.subr.bf16.mxu0 0
  %279 = vmatpush1.bf16.msra.mxu0 0
  %280 = vmatprep.subr.bf16.mxu0 0
  %281 = vmatpush1.bf16.msra.mxu0 0
  %282 = vmatprep.subr.bf16.mxu0 0
  %283 = vmatpush1.bf16.msra.mxu0 0
  %284 = vmatprep.subr.bf16.mxu0 0
  %285 = vmatpush1.bf16.msra.mxu0 0
  %286 = vmatprep.mubr.bf16.mxu0 0
  %287 = vmatmul.mubr.bf16.gmra.mrb[0].mxu0 %v249
  %v288 = vpop.f32.mrb[0].mxu0
  %v289 = vadd.f32 0.0, %v288
  %v290 = vpop.f32.mrb[0].mxu0
  %v291 = vpop.f32.mrb[0].mxu0
  %v292 = vadd.f32 0.0, %v291
  %v293 = vpop.f32.mrb[0].mxu0
  %294 = vmatprep.mubr.bf16.mxu0 0
  %295 = vmatmul.mubr.bf16.gmra.mrb[0].mxu0 %v252
  %v296 = vpop.f32.mrb[0].mxu0
  %v297 = vadd.f32 0.0, %v296
  %v298 = vpop.f32.mrb[0].mxu0
  %v299 = vpop.f32.mrb[0].mxu0
  %v300 = vadd.f32 0.0, %v299
  %v301 = vpop.f32.mrb[0].mxu0
  %302 = vdwg.mxu0
  %v303 = vadd.f32 %v195, %v289
  %v304 = vadd.f32 %v198, %v292
  %v305 = vadd.f32 %v203, %v297
  %v306 = vadd.f32 %v206, %v300
  %v307 = vld [vmem:[%s2] sm:$0x1]
  %v309 = vlaneseq
  %v310 = vshrl.u32 %v309, 7
  %v311 = vsub.s32 0, %v310
  %v312 = vrot.slane %v307, %v311
  %v314 = vadd.f32 %v303, %v312
  %v315 = vadd.f32 %v304, %v312
  %v316 = vadd.f32 %v305, %v312
  %v317 = vadd.f32 %v306, %v312
  %v318 = vmax.f32 %v314, 0.0
  %v319 = vmax.f32 %v315, 0.0
  %v320 = vmax.f32 %v316, 0.0
  %v321 = vmax.f32 %v317, 0.0
  %322 = vst [vmem:[#allocation2 + $0x1] sm:$0xff] %v318
  %323 = vst [vmem:[#allocation2 + $0x9] sm:$0xff] %v319
  %324 = vst [vmem:[#allocation2 + $0x19] sm:$0xff] %v320
  %325 = vst [vmem:[#allocation2 + $0x21] sm:$0xff] %v321
  %326 = vst [vmem:[#allocation2] sm:$0x1] 0.0
  %327 = vst [vmem:[#allocation2 + $0x18] sm:$0x1] 0.0
  %328 = vst [vmem:[#allocation2 + $0x11] sm:$0x1] 0.0
  %329 = vst [vmem:[#allocation2 + $0x29] sm:$0x1] 0.0
  %v330 = vld [vmem:[#allocation2] sm:$0xff]
  %v331 = vld [vmem:[#allocation2 + $0x8] sm:$0xff]
  %v332 = vld [vmem:[#allocation2 + $0x18] sm:$0xff]
  %v333 = vld [vmem:[#allocation2 + $0x20] sm:$0xff]
  %v334 = vpack.c.bf16 %v331, %v330
  %v335 = vpack.c.bf16 %v333, %v332
  %v336 = vld [vmem:[%s3] sm:$0xf]
  %v337 = vld [vmem:[%s3 + $0x4] sm:$0xf]
  %v338 = vld [vmem:[%s3 + $0x8] sm:$0xf]
  %v339 = vld [vmem:[%s3 + $0xc] sm:$0xf]
  %v340 = vld [vmem:[%s3 + $0x10] sm:$0xf]
  %v341 = vld [vmem:[%s3 + $0x14] sm:$0xf]
  %v342 = vld [vmem:[%s3 + $0x18] sm:$0xf]
  %v343 = vld [vmem:[%s3 + $0x1c] sm:$0xf]
  %v344 = vld [vmem:[%s3 + $0x20] sm:$0xf]
  %v345 = vld [vmem:[%s3 + $0x24] sm:$0xf]
  %v346 = vld [vmem:[%s3 + $0x28] sm:$0xf]
  %v347 = vld [vmem:[%s3 + $0x2c] sm:$0xf]
  %v348 = vld [vmem:[%s3 + $0x30] sm:$0xf]
  %v349 = vld [vmem:[%s3 + $0x34] sm:$0xf]
  %v350 = vld [vmem:[%s3 + $0x38] sm:$0xf]
  %v351 = vld [vmem:[%s3 + $0x3c] sm:$0xf]
  %v352 = vld [vmem:[#allocation2 + $0x1] sm:$0xff]
  %v353 = vld [vmem:[#allocation2 + $0x9] sm:$0xff]
  %v354 = vld [vmem:[#allocation2 + $0x19] sm:$0xff]
  %v355 = vld [vmem:[#allocation2 + $0x21] sm:$0xff]
  %v356 = vpack.c.bf16 %v353, %v352
  %v357 = vpack.c.bf16 %v355, %v354
  %s358 = scalar_lea.vmem %s3, 64
  %v359 = vld [vmem:[%s358] sm:$0xf]
  %v360 = vld [vmem:[%s358 + $0x4] sm:$0xf]
  %v361 = vld [vmem:[%s358 + $0x8] sm:$0xf]
  %v362 = vld [vmem:[%s358 + $0xc] sm:$0xf]
  %v363 = vld [vmem:[%s358 + $0x10] sm:$0xf]
  %v364 = vld [vmem:[%s358 + $0x14] sm:$0xf]
  %v365 = vld [vmem:[%s358 + $0x18] sm:$0xf]
  %v366 = vld [vmem:[%s358 + $0x1c] sm:$0xf]
  %v367 = vld [vmem:[%s358 + $0x20] sm:$0xf]
  %v368 = vld [vmem:[%s358 + $0x24] sm:$0xf]
  %v369 = vld [vmem:[%s358 + $0x28] sm:$0xf]
  %v370 = vld [vmem:[%s358 + $0x2c] sm:$0xf]
  %v371 = vld [vmem:[%s358 + $0x30] sm:$0xf]
  %v372 = vld [vmem:[%s358 + $0x34] sm:$0xf]
  %v373 = vld [vmem:[%s358 + $0x38] sm:$0xf]
  %v374 = vld [vmem:[%s358 + $0x3c] sm:$0xf]
  %v391 = vunpack.c.l.b16 %v359
  %v392 = vunpack.c.l.b16 %v360
  %v393 = vunpack.c.l.b16 %v361
  %v394 = vunpack.c.l.b16 %v362
  %v395 = vunpack.c.l.b16 %v363
  %v396 = vunpack.c.l.b16 %v364
  %v397 = vunpack.c.l.b16 %v365
  %v398 = vunpack.c.l.b16 %v366
  %v399 = vunpack.c.l.b16 %v367
  %v400 = vunpack.c.l.b16 %v368
  %v401 = vunpack.c.l.b16 %v369
  %v402 = vunpack.c.l.b16 %v370
  %v403 = vunpack.c.l.b16 %v371
  %v404 = vunpack.c.l.b16 %v372
  %v405 = vunpack.c.l.b16 %v373
  %v406 = vunpack.c.l.b16 %v374
  %v407 = vpack.c.b16 %v392, %v391
  %v408 = vpack.c.b16 %v394, %v393
  %v409 = vpack.c.b16 %v396, %v395
  %v410 = vpack.c.b16 %v398, %v397
  %v411 = vpack.c.b16 %v400, %v399
  %v412 = vpack.c.b16 %v402, %v401
  %v413 = vpack.c.b16 %v404, %v403
  %v414 = vpack.c.b16 %v406, %v405
  %423 = vmatprep.subr.bf16.mxu0 0
  %424 = vmatpush1.bf16.msra.mxu0 %v407
  %425 = vmatprep.subr.bf16.mxu0 0
  %426 = vmatpush1.bf16.msra.mxu0 %v408
  %427 = vmatprep.subr.bf16.mxu0 0
  %428 = vmatpush1.bf16.msra.mxu0 %v409
  %429 = vmatprep.subr.bf16.mxu0 0
  %430 = vmatpush1.bf16.msra.mxu0 %v410
  %431 = vmatprep.subr.bf16.mxu0 0
  %432 = vmatpush1.bf16.msra.mxu0 %v411
  %433 = vmatprep.subr.bf16.mxu0 0
  %434 = vmatpush1.bf16.msra.mxu0 %v412
  %435 = vmatprep.subr.bf16.mxu0 0
  %436 = vmatpush1.bf16.msra.mxu0 %v413
  %437 = vmatprep.subr.bf16.mxu0 0
  %438 = vmatpush1.bf16.msra.mxu0 %v414
  %439 = vmatprep.subr.bf16.mxu0 0
  %440 = vmatpush1.bf16.msra.mxu0 0
  %441 = vmatprep.subr.bf16.mxu0 0
  %442 = vmatpush1.bf16.msra.mxu0 0
  %443 = vmatprep.subr.bf16.mxu0 0
  %444 = vmatpush1.bf16.msra.mxu0 0
  %445 = vmatprep.subr.bf16.mxu0 0
  %446 = vmatpush1.bf16.msra.mxu0 0
  %447 = vmatprep.subr.bf16.mxu0 0
  %448 = vmatpush1.bf16.msra.mxu0 0
  %449 = vmatprep.subr.bf16.mxu0 0
  %450 = vmatpush1.bf16.msra.mxu0 0
  %451 = vmatprep.subr.bf16.mxu0 0
  %452 = vmatpush1.bf16.msra.mxu0 0
  %453 = vmatprep.subr.bf16.mxu0 0
  %454 = vmatpush1.bf16.msra.mxu0 0
  %455 = vmatprep.mubr.bf16.mxu0 0
  %456 = vmatmul.mubr.bf16.gmra.mrb[0].mxu0 %v356
  %v457 = vpop.f32.mrb[0].mxu0
  %v458 = vadd.f32 0.0, %v457
  %v459 = vpop.f32.mrb[0].mxu0
  %v460 = vpop.f32.mrb[0].mxu0
  %v461 = vadd.f32 0.0, %v460
  %v462 = vpop.f32.mrb[0].mxu0
  %463 = vmatprep.mubr.bf16.mxu0 0
  %464 = vmatmul.mubr.bf16.gmra.mrb[0].mxu0 %v357
  %v465 = vpop.f32.mrb[0].mxu0
  %v466 = vadd.f32 0.0, %v465
  %v467 = vpop.f32.mrb[0].mxu0
  %v468 = vpop.f32.mrb[0].mxu0
  %v469 = vadd.f32 0.0, %v468
  %v470 = vpop.f32.mrb[0].mxu0
  %471 = vdwg.mxu0
  %v488 = vunpack.c.l.b16 %v336
  %v489 = vunpack.c.l.b16 %v337
  %v490 = vunpack.c.l.b16 %v338
  %v491 = vunpack.c.l.b16 %v339
  %v492 = vunpack.c.l.b16 %v340
  %v493 = vunpack.c.l.b16 %v341
  %v494 = vunpack.c.l.b16 %v342
  %v495 = vunpack.c.l.b16 %v343
  %v496 = vunpack.c.l.b16 %v344
  %v497 = vunpack.c.l.b16 %v345
  %v498 = vunpack.c.l.b16 %v346
  %v499 = vunpack.c.l.b16 %v347
  %v500 = vunpack.c.l.b16 %v348
  %v501 = vunpack.c.l.b16 %v349
  %v502 = vunpack.c.l.b16 %v350
  %v503 = vunpack.c.l.b16 %v351
  %v504 = vpack.c.b16 %v489, %v488
  %v505 = vpack.c.b16 %v491, %v490
  %v506 = vpack.c.b16 %v493, %v492
  %v507 = vpack.c.b16 %v495, %v494
  %v508 = vpack.c.b16 %v497, %v496
  %v509 = vpack.c.b16 %v499, %v498
  %v510 = vpack.c.b16 %v501, %v500
  %v511 = vpack.c.b16 %v503, %v502
  %520 = vmatprep.subr.bf16.mxu0 0
  %521 = vmatpush1.bf16.msra.mxu0 %v504
  %522 = vmatprep.subr.bf16.mxu0 0
  %523 = vmatpush1.bf16.msra.mxu0 %v505
  %524 = vmatprep.subr.bf16.mxu0 0
  %525 = vmatpush1.bf16.msra.mxu0 %v506
  %526 = vmatprep.subr.bf16.mxu0 0
  %527 = vmatpush1.bf16.msra.mxu0 %v507
  %528 = vmatprep.subr.bf16.mxu0 0
  %529 = vmatpush1.bf16.msra.mxu0 %v508
  %530 = vmatprep.subr.bf16.mxu0 0
  %531 = vmatpush1.bf16.msra.mxu0 %v509
  %532 = vmatprep.subr.bf16.mxu0 0
  %533 = vmatpush1.bf16.msra.mxu0 %v510
  %534 = vmatprep.subr.bf16.mxu0 0
  %535 = vmatpush1.bf16.msra.mxu0 %v511
  %536 = vmatprep.subr.bf16.mxu0 0
  %537 = vmatpush1.bf16.msra.mxu0 0
  %538 = vmatprep.subr.bf16.mxu0 0
  %539 = vmatpush1.bf16.msra.mxu0 0
  %540 = vmatprep.subr.bf16.mxu0 0
  %541 = vmatpush1.bf16.msra.mxu0 0
  %542 = vmatprep.subr.bf16.mxu0 0
  %543 = vmatpush1.bf16.msra.mxu0 0
  %544 = vmatprep.subr.bf16.mxu0 0
  %545 = vmatpush1.bf16.msra.mxu0 0
  %546 = vmatprep.subr.bf16.mxu0 0
  %547 = vmatpush1.bf16.msra.mxu0 0
  %548 = vmatprep.subr.bf16.mxu0 0
  %549 = vmatpush1.bf16.msra.mxu0 0
  %550 = vmatprep.subr.bf16.mxu0 0
  %551 = vmatpush1.bf16.msra.mxu0 0
  %552 = vmatprep.mubr.bf16.mxu0 0
  %553 = vmatmul.mubr.bf16.gmra.mrb[0].mxu0 %v334
  %v554 = vpop.f32.mrb[0].mxu0
  %v555 = vadd.f32 %v458, %v554
  %v556 = vpop.f32.mrb[0].mxu0
  %v557 = vpop.f32.mrb[0].mxu0
  %v558 = vadd.f32 %v461, %v557
  %v559 = vpop.f32.mrb[0].mxu0
  %560 = vmatprep.mubr.bf16.mxu0 0
  %561 = vmatmul.mubr.bf16.gmra.mrb[0].mxu0 %v335
  %v562 = vpop.f32.mrb[0].mxu0
  %v563 = vadd.f32 %v466, %v562
  %v564 = vpop.f32.mrb[0].mxu0
  %v565 = vpop.f32.mrb[0].mxu0
  %v566 = vadd.f32 %v469, %v565
  %v567 = vpop.f32.mrb[0].mxu0
  %568 = vdwg.mxu0
  %v569 = vld [vmem:[#allocation2 + $0x2] sm:$0xff]
  %v570 = vld [vmem:[#allocation2 + $0xa] sm:$0xff]
  %v571 = vld [vmem:[#allocation2 + $0x1a] sm:$0xff]
  %v572 = vld [vmem:[#allocation2 + $0x22] sm:$0xff]
  %v573 = vpack.c.bf16 %v570, %v569
  %v574 = vpack.c.bf16 %v572, %v571
  %s575 = scalar_lea.vmem %s3, 128
  %v576 = vld [vmem:[%s575] sm:$0xf]
  %v577 = vld [vmem:[%s575 + $0x4] sm:$0xf]
  %v578 = vld [vmem:[%s575 + $0x8] sm:$0xf]
  %v579 = vld [vmem:[%s575 + $0xc] sm:$0xf]
  %v580 = vld [vmem:[%s575 + $0x10] sm:$0xf]
  %v581 = vld [vmem:[%s575 + $0x14] sm:$0xf]
  %v582 = vld [vmem:[%s575 + $0x18] sm:$0xf]
  %v583 = vld [vmem:[%s575 + $0x1c] sm:$0xf]
  %v584 = vld [vmem:[%s575 + $0x20] sm:$0xf]
  %v585 = vld [vmem:[%s575 + $0x24] sm:$0xf]
  %v586 = vld [vmem:[%s575 + $0x28] sm:$0xf]
  %v587 = vld [vmem:[%s575 + $0x2c] sm:$0xf]
  %v588 = vld [vmem:[%s575 + $0x30] sm:$0xf]
  %v589 = vld [vmem:[%s575 + $0x34] sm:$0xf]
  %v590 = vld [vmem:[%s575 + $0x38] sm:$0xf]
  %v591 = vld [vmem:[%s575 + $0x3c] sm:$0xf]
  %v608 = vunpack.c.l.b16 %v576
  %v609 = vunpack.c.l.b16 %v577
  %v610 = vunpack.c.l.b16 %v578
  %v611 = vunpack.c.l.b16 %v579
  %v612 = vunpack.c.l.b16 %v580
  %v613 = vunpack.c.l.b16 %v581
  %v614 = vunpack.c.l.b16 %v582
  %v615 = vunpack.c.l.b16 %v583
  %v616 = vunpack.c.l.b16 %v584
  %v617 = vunpack.c.l.b16 %v585
  %v618 = vunpack.c.l.b16 %v586
  %v619 = vunpack.c.l.b16 %v587
  %v620 = vunpack.c.l.b16 %v588
  %v621 = vunpack.c.l.b16 %v589
  %v622 = vunpack.c.l.b16 %v590
  %v623 = vunpack.c.l.b16 %v591
  %v624 = vpack.c.b16 %v609, %v608
  %v625 = vpack.c.b16 %v611, %v610
  %v626 = vpack.c.b16 %v613, %v612
  %v627 = vpack.c.b16 %v615, %v614
  %v628 = vpack.c.b16 %v617, %v616
  %v629 = vpack.c.b16 %v619, %v618
  %v630 = vpack.c.b16 %v621, %v620
  %v631 = vpack.c.b16 %v623, %v622
  %640 = vmatprep.subr.bf16.mxu0 0
  %641 = vmatpush1.bf16.msra.mxu0 %v624
  %642 = vmatprep.subr.bf16.mxu0 0
  %643 = vmatpush1.bf16.msra.mxu0 %v625
  %644 = vmatprep.subr.bf16.mxu0 0
  %645 = vmatpush1.bf16.msra.mxu0 %v626
  %646 = vmatprep.subr.bf16.mxu0 0
  %647 = vmatpush1.bf16.msra.mxu0 %v627
  %648 = vmatprep.subr.bf16.mxu0 0
  %649 = vmatpush1.bf16.msra.mxu0 %v628
  %650 = vmatprep.subr.bf16.mxu0 0
  %651 = vmatpush1.bf16.msra.mxu0 %v629
  %652 = vmatprep.subr.bf16.mxu0 0
  %653 = vmatpush1.bf16.msra.mxu0 %v630
  %654 = vmatprep.subr.bf16.mxu0 0
  %655 = vmatpush1.bf16.msra.mxu0 %v631
  %656 = vmatprep.subr.bf16.mxu0 0
  %657 = vmatpush1.bf16.msra.mxu0 0
  %658 = vmatprep.subr.bf16.mxu0 0
  %659 = vmatpush1.bf16.msra.mxu0 0
  %660 = vmatprep.subr.bf16.mxu0 0
  %661 = vmatpush1.bf16.msra.mxu0 0
  %662 = vmatprep.subr.bf16.mxu0 0
  %663 = vmatpush1.bf16.msra.mxu0 0
  %664 = vmatprep.subr.bf16.mxu0 0
  %665 = vmatpush1.bf16.msra.mxu0 0
  %666 = vmatprep.subr.bf16.mxu0 0
  %667 = vmatpush1.bf16.msra.mxu0 0
  %668 = vmatprep.subr.bf16.mxu0 0
  %669 = vmatpush1.bf16.msra.mxu0 0
  %670 = vmatprep.subr.bf16.mxu0 0
  %671 = vmatpush1.bf16.msra.mxu0 0
  %672 = vmatprep.mubr.bf16.mxu0 0
  %673 = vmatmul.mubr.bf16.gmra.mrb[0].mxu0 %v573
  %v674 = vpop.f32.mrb[0].mxu0
  %v675 = vadd.f32 0.0, %v674
  %v676 = vpop.f32.mrb[0].mxu0
  %v677 = vpop.f32.mrb[0].mxu0
  %v678 = vadd.f32 0.0, %v677
  %v679 = vpop.f32.mrb[0].mxu0
  %680 = vmatprep.mubr.bf16.mxu0 0
  %681 = vmatmul.mubr.bf16.gmra.mrb[0].mxu0 %v574
  %v682 = vpop.f32.mrb[0].mxu0
  %v683 = vadd.f32 0.0, %v682
  %v684 = vpop.f32.mrb[0].mxu0
  %v685 = vpop.f32.mrb[0].mxu0
  %v686 = vadd.f32 0.0, %v685
  %v687 = vpop.f32.mrb[0].mxu0
  %688 = vdwg.mxu0
  %v689 = vadd.f32 %v555, %v675
  %v690 = vadd.f32 %v558, %v678
  %v691 = vadd.f32 %v563, %v683
  %v692 = vadd.f32 %v566, %v686
  %v693 = vld [vmem:[%s4] sm:$0x1]
  %v695 = vlaneseq
  %v696 = vshrl.u32 %v695, 7
  %v697 = vsub.s32 0, %v696
  %v698 = vrot.slane %v693, %v697
  %v700 = vadd.f32 %v689, %v698
  %v701 = vadd.f32 %v690, %v698
  %v702 = vadd.f32 %v691, %v698
  %v703 = vadd.f32 %v692, %v698
  %v704 = vmax.f32 %v700, 0.0
  %v705 = vmax.f32 %v701, 0.0
  %v706 = vmax.f32 %v702, 0.0
  %v707 = vmax.f32 %v703, 0.0
  %708 = vst [vmem:[%s5] sm:$0xff] %v704
  %709 = vst [vmem:[%s5 + $0x8] sm:$0xff] %v705
  %710 = vst [vmem:[%s5 + $0x10] sm:$0xff] %v706
  %711 = vst [vmem:[%s5 + $0x18] sm:$0xff] %v707
  // Predicated region
  $region22: #{unet_layer_forward.1} parent=0 // pred_check
    _
  $region23: #{unet_layer_forward.1} parent=0 // pred_check_branch
    %713 = sbr.rel (0) target = $region25
  $region24: #{unet_layer_forward.1} parent=0 // pred_region
    _
  $region25: #{unet_layer_forward.1} parent=0 // pred_fallthru
    _
  // Predicated region
  $region26: #{unet_layer_forward.1} parent=0 // pred_check
    _
  $region27: #{unet_layer_forward.1} parent=0 // pred_check_branch
    %715 = sbr.rel (0) target = $region29
  $region28: #{unet_layer_forward.1} parent=0 // pred_region
    _
  $region29: #{unet_layer_forward.1} parent=0 // pred_fallthru
    _

</llo_original>
